<compile_context>
chip_gen: v5e
topology: v5e:2x2
jax: 0.10.0
libtpu: 0.0.40
codegen_flags: <defaults>
</compile_context>

<pallas_src>
import functools
import math

import jax
import jax.numpy as jnp
from jax.experimental import pallas as pl
from jax.experimental.pallas import tpu as pltpu

LANE = 128
_SQRT_2_OVER_PI = math.sqrt(2.0 / math.pi)


def _round_up(n, m):
    return ((n + m - 1) // m) * m


def _fused_mlp_kernel(add_residual, x_ref, *refs):
    """Fused 5-layer (Linear + tanh-GELU [+ residual]) forward.

    refs = (w0, b0, w1, b1, ..., w4, b4, o_ref). The Python layer loop is
    unrolled at trace time, so intermediates never touch HBM.
    """
    o_ref = refs[-1]
    wb_refs = refs[:-1]

    # Hoisted constants (computed once, reused by every unrolled layer).
    c = jnp.float32(_SQRT_2_OVER_PI)
    coef = jnp.float32(0.044715)

    # Residual / activation carried in f32; only the MXU operands are bf16.
    x = x_ref[...].astype(jnp.float32)  # (TB, D0_pad)

    for l, add_res in enumerate(add_residual):
        w = wb_refs[2 * l][...]       # (Din_pad, Dout_pad) bf16, VMEM-resident
        b = wb_refs[2 * l + 1][...]   # (1, Dout_pad) f32

        # MXU matmul: bf16 x bf16 -> f32 accumulate.
        y = jnp.dot(x.astype(jnp.bfloat16), w,
                    preferred_element_type=jnp.float32)
        y = y + b  # (1, Dout_pad) broadcasts over rows

        # tanh-approx GELU (matches the hand-written PyTorch GELU), f32 math.
        y2 = y * y
        g = 0.5 * y * (1.0 + jnp.tanh(c * y * (1.0 + coef * y2)))

        x = x + g if add_res else g

    o_ref[...] = x.astype(o_ref.dtype)


class ExampleDeepNeuralNetworkPallas:
    """JAX/Pallas port of the PyTorch ExampleDeepNeuralNetwork forward pass."""

    def __init__(self, layer_sizes, use_shortcut, key):
        assert len(layer_sizes) == 6
        self.layer_sizes = list(layer_sizes)
        self.use_shortcut = use_shortcut

        self.params = []        # f32 (d_in, d_out), (d_out,)  -- source of truth
        self.padded = []        # lane-padded bf16 weight, f32 bias (1, d_out_pad)
        self.add_residual = []  # per-layer shortcut flag (d_in == d_out)

        for i in range(5):
            d_in, d_out = layer_sizes[i], layer_sizes[i + 1]
            key, kw, kb = jax.random.split(key, 3)
            # Deterministic init (same fan-in uniform range as nn.Linear default).
            bound = 1.0 / math.sqrt(d_in)
            w = jax.random.uniform(kw, (d_in, d_out), jnp.float32, -bound, bound)
            b = jax.random.uniform(kb, (d_out,), jnp.float32, -bound, bound)
            self.params.append((w, b))
            self.add_residual.append(bool(use_shortcut and d_in == d_out))

            din_p = _round_up(d_in, LANE)
            dout_p = _round_up(d_out, LANE)
            # Zero padding keeps the valid columns exact: padded weight rows/cols
            # and bias entries are 0, GELU(0) == 0, so pad lanes stay 0 all the
            # way through (including through the residual adds).
            w_p = (jnp.zeros((din_p, dout_p), jnp.bfloat16)
                   .at[:d_in, :d_out].set(w.astype(jnp.bfloat16)))
            b_p = (jnp.zeros((1, dout_p), jnp.float32)
                   .at[:, :d_out].set(b[None, :]))
            self.padded.append((w_p, b_p))

    def __call__(self, x):
        B, d0 = x.shape
        assert d0 == self.layer_sizes[0]
        d0_p = _round_up(d0, LANE)
        d_last = self.layer_sizes[-1]
        d_last_p = _round_up(d_last, LANE)

        # Batch tiling: one block for small batches (padded to 16 sublanes for
        # bf16 packing); 512-row tiles + parallel grid for large batches
        # (pipelined DMA, dual-TensorCore sharding on v7x).
        if B <= 512:
            B_pad = max(_round_up(B, 16), 16)
            TB = B_pad
        else:
            TB = 512
            B_pad = _round_up(B, TB)

        x_pad = (jnp.zeros((B_pad, d0_p), jnp.float32)
                 .at[:B, :d0].set(x.astype(jnp.float32)))

        kernel = functools.partial(_fused_mlp_kernel, tuple(self.add_residual))

        in_specs = [pl.BlockSpec((TB, d0_p), lambda i: (i, 0))]
        flat_inputs = [x_pad]
        for w_p, b_p in self.padded:
            # Constant block index -> weights/biases stay VMEM-resident across
            # all grid steps (no per-step re-DMA of the ~tiny weight slabs).
            in_specs.append(pl.BlockSpec(w_p.shape, lambda i: (0, 0)))
            in_specs.append(pl.BlockSpec(b_p.shape, lambda i: (0, 0)))
            flat_inputs += [w_p, b_p]

        out_pad = pl.pallas_call(
            kernel,
            out_shape=jax.ShapeDtypeStruct((B_pad, d_last_p), jnp.float32),
            grid=(B_pad // TB,),
            in_specs=in_specs,
            out_specs=pl.BlockSpec((TB, d_last_p), lambda i: (i, 0)),
            compiler_params=pltpu.CompilerParams(
                dimension_semantics=("parallel",)),
        )(*flat_inputs)
        # TODO(synk): for much larger layer_sizes, re-derive weight tiling vs the
        # 64 MiB VMEM on v7x instead of whole-array weight blocks.

        return out_pad[:B, :d_last].astype(x.dtype)


def _reference_forward(model, x):
    """Pure-JAX reference using the same numerics (bf16 MXU inputs, f32 accum)."""
    c = jnp.float32(_SQRT_2_OVER_PI)
    coef = jnp.float32(0.044715)
    h = x.astype(jnp.float32)
    for (w, b), add_res in zip(model.params, model.add_residual):
        y = jnp.dot(h.astype(jnp.bfloat16), w.astype(jnp.bfloat16),
                    preferred_element_type=jnp.float32) + b
        y2 = y * y
        g = 0.5 * y * (1.0 + jnp.tanh(c * y * (1.0 + coef * y2)))
        h = h + g if add_res else g
    return h.astype(x.dtype)


if __name__ == "__main__":
    key = jax.random.PRNGKey(0)
    key, kx, kp = jax.random.split(key, 3)

    layer_sizes = [32, 32, 32, 32, 32, 32]  # all-equal sizes so shortcuts apply
    use_shortcut = True
    batch = 8

    x = jax.random.normal(kx, (batch, layer_sizes[0]), jnp.float32)

    model = ExampleDeepNeuralNetworkPallas(layer_sizes, use_shortcut, kp)

    out = jax.block_until_ready(model(x))

    ref = _reference_forward(model, x)
    assert out.shape == (batch, layer_sizes[-1])
    assert jnp.allclose(out, ref, atol=1e-3, rtol=1e-3), float(
        jnp.max(jnp.abs(out - ref)))

    print("KERNEL_OK")
</pallas_src>

<mosaic_0001>
module attributes {stable_mosaic.version = 11 : i64} {
  func.func @_fused_mlp_kernel(%arg0: i32, %arg1: memref<16x128xf32, #tpu.memory_space<vmem>>, %arg2: memref<128x128xbf16, #tpu.memory_space<vmem>>, %arg3: memref<1x128xf32, #tpu.memory_space<vmem>>, %arg4: memref<128x128xbf16, #tpu.memory_space<vmem>>, %arg5: memref<1x128xf32, #tpu.memory_space<vmem>>, %arg6: memref<128x128xbf16, #tpu.memory_space<vmem>>, %arg7: memref<1x128xf32, #tpu.memory_space<vmem>>, %arg8: memref<128x128xbf16, #tpu.memory_space<vmem>>, %arg9: memref<1x128xf32, #tpu.memory_space<vmem>>, %arg10: memref<128x128xbf16, #tpu.memory_space<vmem>>, %arg11: memref<1x128xf32, #tpu.memory_space<vmem>>, %arg12: memref<16x128xf32, #tpu.memory_space<vmem>>) attributes {dimension_semantics = [#tpu.dimension_semantics<parallel>], iteration_bounds = array<i64: 1>, scalar_prefetch = 0 : i64, scratch_operands = 0 : i64, tpu.core_type = #tpu.core_type<tc>, window_params = [{transform_indices = @transform_0, window_bounds = array<i64: 16, 128>}, {pipeline_mode = #tpu.pipeline_mode<synchronous>, transform_indices = @transform_1, window_bounds = array<i64: 128, 128>}, {pipeline_mode = #tpu.pipeline_mode<synchronous>, transform_indices = @transform_2, window_bounds = array<i64: 1, 128>}, {pipeline_mode = #tpu.pipeline_mode<synchronous>, transform_indices = @transform_3, window_bounds = array<i64: 128, 128>}, {pipeline_mode = #tpu.pipeline_mode<synchronous>, transform_indices = @transform_4, window_bounds = array<i64: 1, 128>}, {pipeline_mode = #tpu.pipeline_mode<synchronous>, transform_indices = @transform_5, window_bounds = array<i64: 128, 128>}, {pipeline_mode = #tpu.pipeline_mode<synchronous>, transform_indices = @transform_6, window_bounds = array<i64: 1, 128>}, {pipeline_mode = #tpu.pipeline_mode<synchronous>, transform_indices = @transform_7, window_bounds = array<i64: 128, 128>}, {pipeline_mode = #tpu.pipeline_mode<synchronous>, transform_indices = @transform_8, window_bounds = array<i64: 1, 128>}, {pipeline_mode = #tpu.pipeline_mode<synchronous>, transform_indices = @transform_9, window_bounds = array<i64: 128, 128>}, {pipeline_mode = #tpu.pipeline_mode<synchronous>, transform_indices = @transform_10, window_bounds = array<i64: 1, 128>}, {transform_indices = @transform_11, window_bounds = array<i64: 16, 128>}]} {
    %c0 = arith.constant 0 : index
    %c0_0 = arith.constant 0 : index
    %0 = vector.load %arg1[%c0, %c0_0] : memref<16x128xf32, #tpu.memory_space<vmem>>, vector<16x128xf32>
    %c0_1 = arith.constant 0 : index
    %c0_2 = arith.constant 0 : index
    %1 = vector.load %arg2[%c0_1, %c0_2] : memref<128x128xbf16, #tpu.memory_space<vmem>>, vector<128x128xbf16>
    %c0_3 = arith.constant 0 : index
    %c0_4 = arith.constant 0 : index
    %2 = vector.load %arg3[%c0_3, %c0_4] : memref<1x128xf32, #tpu.memory_space<vmem>>, vector<1x128xf32>
    %3 = arith.truncf %0 : vector<16x128xf32> to vector<16x128xbf16>
    %cst = arith.constant dense<0.000000e+00> : vector<16x128xf32>
    %4 = tpu.matmul %3, %1, %cst {dimension_numbers = #tpu.dot_dimension_numbers<[1], [0], [0], [1], [0, 0, 1, 1], [], []>} : vector<16x128xbf16>, vector<128x128xbf16>, vector<16x128xf32> -> vector<16x128xf32>
    %5 = vector.broadcast %2 : vector<1x128xf32> to vector<16x128xf32>
    %6 = arith.addf %4, %5 : vector<16x128xf32>
    %7 = arith.mulf %6, %6 : vector<16x128xf32>
    %cst_5 = arith.constant 5.000000e-01 : f32
    %8 = vector.broadcast %cst_5 : f32 to vector<16x128xf32>
    %9 = arith.mulf %8, %6 : vector<16x128xf32>
    %cst_6 = arith.constant 0.797884583 : f32
    %10 = vector.broadcast %cst_6 : f32 to vector<16x128xf32>
    %11 = arith.mulf %10, %6 : vector<16x128xf32>
    %cst_7 = arith.constant 4.471500e-02 : f32
    %12 = vector.broadcast %cst_7 : f32 to vector<16x128xf32>
    %13 = arith.mulf %12, %7 : vector<16x128xf32>
    %cst_8 = arith.constant 1.000000e+00 : f32
    %14 = vector.broadcast %cst_8 : f32 to vector<16x128xf32>
    %15 = arith.addf %14, %13 : vector<16x128xf32>
    %16 = arith.mulf %11, %15 : vector<16x128xf32>
    %17 = math.tanh %16 : vector<16x128xf32>
    %cst_9 = arith.constant 1.000000e+00 : f32
    %18 = vector.broadcast %cst_9 : f32 to vector<16x128xf32>
    %19 = arith.addf %18, %17 : vector<16x128xf32>
    %20 = arith.mulf %9, %19 : vector<16x128xf32>
    %21 = arith.addf %0, %20 : vector<16x128xf32>
    %c0_10 = arith.constant 0 : index
    %c0_11 = arith.constant 0 : index
    %22 = vector.load %arg4[%c0_10, %c0_11] : memref<128x128xbf16, #tpu.memory_space<vmem>>, vector<128x128xbf16>
    %c0_12 = arith.constant 0 : index
    %c0_13 = arith.constant 0 : index
    %23 = vector.load %arg5[%c0_12, %c0_13] : memref<1x128xf32, #tpu.memory_space<vmem>>, vector<1x128xf32>
    %24 = arith.truncf %21 : vector<16x128xf32> to vector<16x128xbf16>
    %cst_14 = arith.constant dense<0.000000e+00> : vector<16x128xf32>
    %25 = tpu.matmul %24, %22, %cst_14 {dimension_numbers = #tpu.dot_dimension_numbers<[1], [0], [0], [1], [0, 0, 1, 1], [], []>} : vector<16x128xbf16>, vector<128x128xbf16>, vector<16x128xf32> -> vector<16x128xf32>
    %26 = vector.broadcast %23 : vector<1x128xf32> to vector<16x128xf32>
    %27 = arith.addf %25, %26 : vector<16x128xf32>
    %28 = arith.mulf %27, %27 : vector<16x128xf32>
    %cst_15 = arith.constant 5.000000e-01 : f32
    %29 = vector.broadcast %cst_15 : f32 to vector<16x128xf32>
    %30 = arith.mulf %29, %27 : vector<16x128xf32>
    %cst_16 = arith.constant 0.797884583 : f32
    %31 = vector.broadcast %cst_16 : f32 to vector<16x128xf32>
    %32 = arith.mulf %31, %27 : vector<16x128xf32>
    %cst_17 = arith.constant 4.471500e-02 : f32
    %33 = vector.broadcast %cst_17 : f32 to vector<16x128xf32>
    %34 = arith.mulf %33, %28 : vector<16x128xf32>
    %cst_18 = arith.constant 1.000000e+00 : f32
    %35 = vector.broadcast %cst_18 : f32 to vector<16x128xf32>
    %36 = arith.addf %35, %34 : vector<16x128xf32>
    %37 = arith.mulf %32, %36 : vector<16x128xf32>
    %38 = math.tanh %37 : vector<16x128xf32>
    %cst_19 = arith.constant 1.000000e+00 : f32
    %39 = vector.broadcast %cst_19 : f32 to vector<16x128xf32>
    %40 = arith.addf %39, %38 : vector<16x128xf32>
    %41 = arith.mulf %30, %40 : vector<16x128xf32>
    %42 = arith.addf %21, %41 : vector<16x128xf32>
    %c0_20 = arith.constant 0 : index
    %c0_21 = arith.constant 0 : index
    %43 = vector.load %arg6[%c0_20, %c0_21] : memref<128x128xbf16, #tpu.memory_space<vmem>>, vector<128x128xbf16>
    %c0_22 = arith.constant 0 : index
    %c0_23 = arith.constant 0 : index
    %44 = vector.load %arg7[%c0_22, %c0_23] : memref<1x128xf32, #tpu.memory_space<vmem>>, vector<1x128xf32>
    %45 = arith.truncf %42 : vector<16x128xf32> to vector<16x128xbf16>
    %cst_24 = arith.constant dense<0.000000e+00> : vector<16x128xf32>
    %46 = tpu.matmul %45, %43, %cst_24 {dimension_numbers = #tpu.dot_dimension_numbers<[1], [0], [0], [1], [0, 0, 1, 1], [], []>} : vector<16x128xbf16>, vector<128x128xbf16>, vector<16x128xf32> -> vector<16x128xf32>
    %47 = vector.broadcast %44 : vector<1x128xf32> to vector<16x128xf32>
    %48 = arith.addf %46, %47 : vector<16x128xf32>
    %49 = arith.mulf %48, %48 : vector<16x128xf32>
    %cst_25 = arith.constant 5.000000e-01 : f32
    %50 = vector.broadcast %cst_25 : f32 to vector<16x128xf32>
    %51 = arith.mulf %50, %48 : vector<16x128xf32>
    %cst_26 = arith.constant 0.797884583 : f32
    %52 = vector.broadcast %cst_26 : f32 to vector<16x128xf32>
    %53 = arith.mulf %52, %48 : vector<16x128xf32>
    %cst_27 = arith.constant 4.471500e-02 : f32
    %54 = vector.broadcast %cst_27 : f32 to vector<16x128xf32>
    %55 = arith.mulf %54, %49 : vector<16x128xf32>
    %cst_28 = arith.constant 1.000000e+00 : f32
    %56 = vector.broadcast %cst_28 : f32 to vector<16x128xf32>
    %57 = arith.addf %56, %55 : vector<16x128xf32>
    %58 = arith.mulf %53, %57 : vector<16x128xf32>
    %59 = math.tanh %58 : vector<16x128xf32>
    %cst_29 = arith.constant 1.000000e+00 : f32
    %60 = vector.broadcast %cst_29 : f32 to vector<16x128xf32>
    %61 = arith.addf %60, %59 : vector<16x128xf32>
    %62 = arith.mulf %51, %61 : vector<16x128xf32>
    %63 = arith.addf %42, %62 : vector<16x128xf32>
    %c0_30 = arith.constant 0 : index
    %c0_31 = arith.constant 0 : index
    %64 = vector.load %arg8[%c0_30, %c0_31] : memref<128x128xbf16, #tpu.memory_space<vmem>>, vector<128x128xbf16>
    %c0_32 = arith.constant 0 : index
    %c0_33 = arith.constant 0 : index
    %65 = vector.load %arg9[%c0_32, %c0_33] : memref<1x128xf32, #tpu.memory_space<vmem>>, vector<1x128xf32>
    %66 = arith.truncf %63 : vector<16x128xf32> to vector<16x128xbf16>
    %cst_34 = arith.constant dense<0.000000e+00> : vector<16x128xf32>
    %67 = tpu.matmul %66, %64, %cst_34 {dimension_numbers = #tpu.dot_dimension_numbers<[1], [0], [0], [1], [0, 0, 1, 1], [], []>} : vector<16x128xbf16>, vector<128x128xbf16>, vector<16x128xf32> -> vector<16x128xf32>
    %68 = vector.broadcast %65 : vector<1x128xf32> to vector<16x128xf32>
    %69 = arith.addf %67, %68 : vector<16x128xf32>
    %70 = arith.mulf %69, %69 : vector<16x128xf32>
    %cst_35 = arith.constant 5.000000e-01 : f32
    %71 = vector.broadcast %cst_35 : f32 to vector<16x128xf32>
    %72 = arith.mulf %71, %69 : vector<16x128xf32>
    %cst_36 = arith.constant 0.797884583 : f32
    %73 = vector.broadcast %cst_36 : f32 to vector<16x128xf32>
    %74 = arith.mulf %73, %69 : vector<16x128xf32>
    %cst_37 = arith.constant 4.471500e-02 : f32
    %75 = vector.broadcast %cst_37 : f32 to vector<16x128xf32>
    %76 = arith.mulf %75, %70 : vector<16x128xf32>
    %cst_38 = arith.constant 1.000000e+00 : f32
    %77 = vector.broadcast %cst_38 : f32 to vector<16x128xf32>
    %78 = arith.addf %77, %76 : vector<16x128xf32>
    %79 = arith.mulf %74, %78 : vector<16x128xf32>
    %80 = math.tanh %79 : vector<16x128xf32>
    %cst_39 = arith.constant 1.000000e+00 : f32
    %81 = vector.broadcast %cst_39 : f32 to vector<16x128xf32>
    %82 = arith.addf %81, %80 : vector<16x128xf32>
    %83 = arith.mulf %72, %82 : vector<16x128xf32>
    %84 = arith.addf %63, %83 : vector<16x128xf32>
    %c0_40 = arith.constant 0 : index
    %c0_41 = arith.constant 0 : index
    %85 = vector.load %arg10[%c0_40, %c0_41] : memref<128x128xbf16, #tpu.memory_space<vmem>>, vector<128x128xbf16>
    %c0_42 = arith.constant 0 : index
    %c0_43 = arith.constant 0 : index
    %86 = vector.load %arg11[%c0_42, %c0_43] : memref<1x128xf32, #tpu.memory_space<vmem>>, vector<1x128xf32>
    %87 = arith.truncf %84 : vector<16x128xf32> to vector<16x128xbf16>
    %cst_44 = arith.constant dense<0.000000e+00> : vector<16x128xf32>
    %88 = tpu.matmul %87, %85, %cst_44 {dimension_numbers = #tpu.dot_dimension_numbers<[1], [0], [0], [1], [0, 0, 1, 1], [], []>} : vector<16x128xbf16>, vector<128x128xbf16>, vector<16x128xf32> -> vector<16x128xf32>
    %89 = vector.broadcast %86 : vector<1x128xf32> to vector<16x128xf32>
    %90 = arith.addf %88, %89 : vector<16x128xf32>
    %91 = arith.mulf %90, %90 : vector<16x128xf32>
    %cst_45 = arith.constant 5.000000e-01 : f32
    %92 = vector.broadcast %cst_45 : f32 to vector<16x128xf32>
    %93 = arith.mulf %92, %90 : vector<16x128xf32>
    %cst_46 = arith.constant 0.797884583 : f32
    %94 = vector.broadcast %cst_46 : f32 to vector<16x128xf32>
    %95 = arith.mulf %94, %90 : vector<16x128xf32>
    %cst_47 = arith.constant 4.471500e-02 : f32
    %96 = vector.broadcast %cst_47 : f32 to vector<16x128xf32>
    %97 = arith.mulf %96, %91 : vector<16x128xf32>
    %cst_48 = arith.constant 1.000000e+00 : f32
    %98 = vector.broadcast %cst_48 : f32 to vector<16x128xf32>
    %99 = arith.addf %98, %97 : vector<16x128xf32>
    %100 = arith.mulf %95, %99 : vector<16x128xf32>
    %101 = math.tanh %100 : vector<16x128xf32>
    %cst_49 = arith.constant 1.000000e+00 : f32
    %102 = vector.broadcast %cst_49 : f32 to vector<16x128xf32>
    %103 = arith.addf %102, %101 : vector<16x128xf32>
    %104 = arith.mulf %93, %103 : vector<16x128xf32>
    %105 = arith.addf %84, %104 : vector<16x128xf32>
    %c0_50 = arith.constant 0 : index
    %c0_51 = arith.constant 0 : index
    %106 = vector.load %arg12[%c0_50, %c0_51] : memref<16x128xf32, #tpu.memory_space<vmem>>, vector<16x128xf32>
    tpu.vector_store %arg12[%c0_50, %c0_51], %105 {strides = array<i32>} : memref<16x128xf32, #tpu.memory_space<vmem>>, vector<16x128xf32>,
    return
  }
  func.func @transform_0(%arg0: i32) -> (i32, i32) {
    %c0_i32 = arith.constant 0 : i32
    %c0_i32_0 = arith.constant 0 : i32
    return %arg0, %c0_i32 : i32, i32
  }
  func.func @transform_1(%arg0: i32) -> (i32, i32) {
    %c0_i32 = arith.constant 0 : i32
    %c0_i32_0 = arith.constant 0 : i32
    %c0_i32_1 = arith.constant 0 : i32
    return %c0_i32, %c0_i32_0 : i32, i32
  }
  func.func @transform_2(%arg0: i32) -> (i32, i32) {
    %c0_i32 = arith.constant 0 : i32
    %c0_i32_0 = arith.constant 0 : i32
    %c0_i32_1 = arith.constant 0 : i32
    return %c0_i32, %c0_i32_0 : i32, i32
  }
  func.func @transform_3(%arg0: i32) -> (i32, i32) {
    %c0_i32 = arith.constant 0 : i32
    %c0_i32_0 = arith.constant 0 : i32
    %c0_i32_1 = arith.constant 0 : i32
    return %c0_i32, %c0_i32_0 : i32, i32
  }
  func.func @transform_4(%arg0: i32) -> (i32, i32) {
    %c0_i32 = arith.constant 0 : i32
    %c0_i32_0 = arith.constant 0 : i32
    %c0_i32_1 = arith.constant 0 : i32
    return %c0_i32, %c0_i32_0 : i32, i32
  }
  func.func @transform_5(%arg0: i32) -> (i32, i32) {
    %c0_i32 = arith.constant 0 : i32
    %c0_i32_0 = arith.constant 0 : i32
    %c0_i32_1 = arith.constant 0 : i32
    return %c0_i32, %c0_i32_0 : i32, i32
  }
  func.func @transform_6(%arg0: i32) -> (i32, i32) {
    %c0_i32 = arith.constant 0 : i32
    %c0_i32_0 = arith.constant 0 : i32
    %c0_i32_1 = arith.constant 0 : i32
    return %c0_i32, %c0_i32_0 : i32, i32
  }
  func.func @transform_7(%arg0: i32) -> (i32, i32) {
    %c0_i32 = arith.constant 0 : i32
    %c0_i32_0 = arith.constant 0 : i32
    %c0_i32_1 = arith.constant 0 : i32
    return %c0_i32, %c0_i32_0 : i32, i32
  }
  func.func @transform_8(%arg0: i32) -> (i32, i32) {
    %c0_i32 = arith.constant 0 : i32
    %c0_i32_0 = arith.constant 0 : i32
    %c0_i32_1 = arith.constant 0 : i32
    return %c0_i32, %c0_i32_0 : i32, i32
  }
  func.func @transform_9(%arg0: i32) -> (i32, i32) {
    %c0_i32 = arith.constant 0 : i32
    %c0_i32_0 = arith.constant 0 : i32
    %c0_i32_1 = arith.constant 0 : i32
    return %c0_i32, %c0_i32_0 : i32, i32
  }
  func.func @transform_10(%arg0: i32) -> (i32, i32) {
    %c0_i32 = arith.constant 0 : i32
    %c0_i32_0 = arith.constant 0 : i32
    %c0_i32_1 = arith.constant 0 : i32
    return %c0_i32, %c0_i32_0 : i32, i32
  }
  func.func @transform_11(%arg0: i32) -> (i32, i32) {
    %c0_i32 = arith.constant 0 : i32
    %c0_i32_0 = arith.constant 0 : i32
    return %arg0, %c0_i32 : i32, i32
  }
}

</mosaic_0001>

<llo_original>
// kernel: tpu_custom_call.1
$region0: #{tpu_custom_call.1}
  #allocation0 [shape = 'u32[]', space=smem, size = 0x4, offset = 0x4, fixed_abs, tag = 'smem constant byte address 0x4 - core index']
  #allocation1 [shape = 'u32[72,128]{1,0:T(1,128)}', space=vmem, size = 0x9000, scoped, tag = 'internal scratch']
  %s0 = inlined_call_operand.hbm [shape: f32[16,128], index: 0, kind: input, shape index: {}]
  %s1 = inlined_call_operand.hbm [shape: bf16[128,128], index: 1, kind: input, shape index: {}]
  %s2 = inlined_call_operand.vmem [shape: f32[1,128], index: 2, kind: input, shape index: {}]
  %s3 = inlined_call_operand.hbm [shape: bf16[128,128], index: 3, kind: input, shape index: {}]
  %s4 = inlined_call_operand.vmem [shape: f32[1,128], index: 4, kind: input, shape index: {}]
  %s5 = inlined_call_operand.hbm [shape: bf16[128,128], index: 5, kind: input, shape index: {}]
  %s6 = inlined_call_operand.vmem [shape: f32[1,128], index: 6, kind: input, shape index: {}]
  %s7 = inlined_call_operand.hbm [shape: bf16[128,128], index: 7, kind: input, shape index: {}]
  %s8 = inlined_call_operand.vmem [shape: f32[1,128], index: 8, kind: input, shape index: {}]
  %s9 = inlined_call_operand.hbm [shape: bf16[128,128], index: 9, kind: input, shape index: {}]
  %s10 = inlined_call_operand.vmem [shape: f32[1,128], index: 10, kind: input, shape index: {}]
  %s11 = inlined_call_operand.hbm [shape: f32[16,128], index: 11, kind: output, shape index: {}]
  %s12 = sld [smem:[#allocation0]]
  $region78: #{tpu_custom_call.1} parent=0
    _
  %s14 = ssub.s32 1, %s12
  %s15 = scalar_select 0, %s14, %s12
  $region1: #{tpu_custom_call.1} parent=0
    #allocation2 [shape = 'u8[8192]{0}', space=vmem, size = 0x2000, scoped, tag = 'input window, operand 0, single buffered']
    #allocation3 [shape = 's32[1]{0}', space=sflag, size = 0x4, scoped, tag = 'scoped memory for tpu_custom_call.1']
    #allocation4 [shape = 's32[1]{0}', space=sflag, size = 0x4, scoped, tag = 'scoped memory for tpu_custom_call.1']
    #allocation5 [shape = 'u8[32768]{0}', space=vmem, size = 0x8000, scoped, tag = 'input window, operand 1, single buffered']
    #allocation6 [shape = 's32[1]{0}', space=sflag, size = 0x4, scoped, tag = 'scoped memory for tpu_custom_call.1']
    #allocation7 [shape = 'u8[32768]{0}', space=vmem, size = 0x8000, scoped, tag = 'input window, operand 3, single buffered']
    #allocation8 [shape = 'u8[32768]{0}', space=vmem, size = 0x8000, scoped, tag = 'input window, operand 5, single buffered']
    #allocation9 [shape = 's32[1]{0}', space=sflag, size = 0x4, scoped, tag = 'scoped memory for tpu_custom_call.1']
    #allocation10 [shape = 'u8[32768]{0}', space=vmem, size = 0x8000, scoped, tag = 'input window, operand 7, single buffered']
    #allocation11 [shape = 'u8[32768]{0}', space=vmem, size = 0x8000, scoped, tag = 'input window, operand 9, single buffered']
    #allocation12 [shape = 's32[1]{0}', space=sflag, size = 0x4, scoped, tag = 'scoped memory for tpu_custom_call.1']
    #allocation13 [shape = 'u8[8192]{0}', space=vmem, size = 0x2000, scoped, tag = 'output window, operand 0, single buffered']
    %16 = vsyncpa [#allocation3], 0
    %17 = vsyncpa [#allocation6], 0
    %18 = vsyncpa [#allocation9], 0
    %19 = vsyncpa [#allocation12], 0
    %20 = vsyncpa [#allocation4], 0
    // Predicated region
    $region2: #{tpu_custom_call.1} parent=1 // pred_check
      _
    $region3: #{tpu_custom_call.1} parent=1 // pred_check_branch
      %22 = sbr.rel (0) target = $region5
    $region4: #{tpu_custom_call.1} parent=1 // pred_region
      %24 = vsyncadd [#allocation3], 0
      %s25 = sshll.u32 %s0, 4
      %s26 = int_to_ptr.hbm [resolvable:$true] %s25
      %s27 = sshll.u32 [#allocation2], 4
      %s28 = int_to_ptr.vmem [resolvable:$true] %s27
      %33 = dma.hbm_to_vmem [thread:$0]  %s26, 256, %s28, [#allocation3], 128, 128, 8
    $region5: #{tpu_custom_call.1} parent=1 // pred_fallthru
      _
    // Predicated region
    $region6: #{tpu_custom_call.1} parent=1 // pred_check
      _
    $region7: #{tpu_custom_call.1} parent=1 // pred_check_branch
      %35 = sbr.rel (0) target = $region9
    $region8: #{tpu_custom_call.1} parent=1 // pred_region
      %37 = vsyncadd [#allocation6], 0
      %s38 = sshll.u32 %s1, 4
      %s39 = int_to_ptr.hbm [resolvable:$true] %s38
      %s40 = sshll.u32 [#allocation5], 4
      %s41 = int_to_ptr.vmem [resolvable:$true] %s40
      %46 = dma.hbm_to_vmem [thread:$0]  %s39, 1024, %s41, [#allocation6], 64, 64, 4
    $region9: #{tpu_custom_call.1} parent=1 // pred_fallthru
      _
    // Predicated region
    $region10: #{tpu_custom_call.1} parent=1 // pred_check
      _
    $region11: #{tpu_custom_call.1} parent=1 // pred_check_branch
      %48 = sbr.rel (0) target = $region13
    $region12: #{tpu_custom_call.1} parent=1 // pred_region
      _
    $region13: #{tpu_custom_call.1} parent=1 // pred_fallthru
      _
    // Predicated region
    $region14: #{tpu_custom_call.1} parent=1 // pred_check
      _
    $region15: #{tpu_custom_call.1} parent=1 // pred_check_branch
      %50 = sbr.rel (0) target = $region17
    $region16: #{tpu_custom_call.1} parent=1 // pred_region
      %52 = vsyncadd [#allocation6], 0
      %s53 = sshll.u32 %s3, 4
      %s54 = int_to_ptr.hbm [resolvable:$true] %s53
      %s55 = sshll.u32 [#allocation7], 4
      %s56 = int_to_ptr.vmem [resolvable:$true] %s55
      %61 = dma.hbm_to_vmem [thread:$0]  %s54, 1024, %s56, [#allocation6], 64, 64, 4
    $region17: #{tpu_custom_call.1} parent=1 // pred_fallthru
      _
    // Predicated region
    $region18: #{tpu_custom_call.1} parent=1 // pred_check
      _
    $region19: #{tpu_custom_call.1} parent=1 // pred_check_branch
      %63 = sbr.rel (0) target = $region21
    $region20: #{tpu_custom_call.1} parent=1 // pred_region
      _
    $region21: #{tpu_custom_call.1} parent=1 // pred_fallthru
      _
    // Predicated region
    $region22: #{tpu_custom_call.1} parent=1 // pred_check
      _
    $region23: #{tpu_custom_call.1} parent=1 // pred_check_branch
      %65 = sbr.rel (0) target = $region25
    $region24: #{tpu_custom_call.1} parent=1 // pred_region
      %67 = vsyncadd [#allocation9], 0
      %s68 = sshll.u32 %s5, 4
      %s69 = int_to_ptr.hbm [resolvable:$true] %s68
      %s70 = sshll.u32 [#allocation8], 4
      %s71 = int_to_ptr.vmem [resolvable:$true] %s70
      %76 = dma.hbm_to_vmem [thread:$0]  %s69, 1024, %s71, [#allocation9], 64, 64, 4
    $region25: #{tpu_custom_call.1} parent=1 // pred_fallthru
      _
    // Predicated region
    $region26: #{tpu_custom_call.1} parent=1 // pred_check
      _
    $region27: #{tpu_custom_call.1} parent=1 // pred_check_branch
      %78 = sbr.rel (0) target = $region29
    $region28: #{tpu_custom_call.1} parent=1 // pred_region
      _
    $region29: #{tpu_custom_call.1} parent=1 // pred_fallthru
      _
    // Predicated region
    $region30: #{tpu_custom_call.1} parent=1 // pred_check
      _
    $region31: #{tpu_custom_call.1} parent=1 // pred_check_branch
      %80 = sbr.rel (0) target = $region33
    $region32: #{tpu_custom_call.1} parent=1 // pred_region
      %82 = vsyncadd [#allocation9], 0
      %s83 = sshll.u32 %s7, 4
      %s84 = int_to_ptr.hbm [resolvable:$true] %s83
      %s85 = sshll.u32 [#allocation10], 4
      %s86 = int_to_ptr.vmem [resolvable:$true] %s85
      %91 = dma.hbm_to_vmem [thread:$0]  %s84, 1024, %s86, [#allocation9], 64, 64, 4
    $region33: #{tpu_custom_call.1} parent=1 // pred_fallthru
      _
    // Predicated region
    $region34: #{tpu_custom_call.1} parent=1 // pred_check
      _
    $region35: #{tpu_custom_call.1} parent=1 // pred_check_branch
      %93 = sbr.rel (0) target = $region37
    $region36: #{tpu_custom_call.1} parent=1 // pred_region
      _
    $region37: #{tpu_custom_call.1} parent=1 // pred_fallthru
      _
    // Predicated region
    $region38: #{tpu_custom_call.1} parent=1 // pred_check
      _
    $region39: #{tpu_custom_call.1} parent=1 // pred_check_branch
      %95 = sbr.rel (0) target = $region41
    $region40: #{tpu_custom_call.1} parent=1 // pred_region
      %97 = vsyncadd [#allocation12], 0
      %s98 = sshll.u32 %s9, 4
      %s99 = int_to_ptr.hbm [resolvable:$true] %s98
      %s100 = sshll.u32 [#allocation11], 4
      %s101 = int_to_ptr.vmem [resolvable:$true] %s100
      %106 = dma.hbm_to_vmem [thread:$0]  %s99, 1024, %s101, [#allocation12], 64, 64, 4
    $region41: #{tpu_custom_call.1} parent=1 // pred_fallthru
      _
    // Predicated region
    $region42: #{tpu_custom_call.1} parent=1 // pred_check
      _
    $region43: #{tpu_custom_call.1} parent=1 // pred_check_branch
      %108 = sbr.rel (0) target = $region45
    $region44: #{tpu_custom_call.1} parent=1 // pred_region
      _
    $region45: #{tpu_custom_call.1} parent=1 // pred_fallthru
      _
    // Predicated region
    $region46: #{tpu_custom_call.1} parent=1 // pred_check
      _
    $region47: #{tpu_custom_call.1} parent=1 // pred_check_branch
      %110 = sbr.rel (0) target = $region49
    $region48: #{tpu_custom_call.1} parent=1 // pred_region
      %112 = dma.done [#allocation3], 256
    $region49: #{tpu_custom_call.1} parent=1 // pred_fallthru
      _
    // Predicated region
    $region50: #{tpu_custom_call.1} parent=1 // pred_check
      _
    $region51: #{tpu_custom_call.1} parent=1 // pred_check_branch
      %114 = sbr.rel (0) target = $region53
    $region52: #{tpu_custom_call.1} parent=1 // pred_region
      %116 = dma.done [#allocation6], 1024
    $region53: #{tpu_custom_call.1} parent=1 // pred_fallthru
      _
    // Predicated region
    $region54: #{tpu_custom_call.1} parent=1 // pred_check
      _
    $region55: #{tpu_custom_call.1} parent=1 // pred_check_branch
      %118 = sbr.rel (0) target = $region57
    $region56: #{tpu_custom_call.1} parent=1 // pred_region
      %120 = dma.done [#allocation6], 1024
    $region57: #{tpu_custom_call.1} parent=1 // pred_fallthru
      _
    // Predicated region
    $region58: #{tpu_custom_call.1} parent=1 // pred_check
      _
    $region59: #{tpu_custom_call.1} parent=1 // pred_check_branch
      %122 = sbr.rel (0) target = $region61
    $region60: #{tpu_custom_call.1} parent=1 // pred_region
      %124 = dma.done [#allocation9], 1024
    $region61: #{tpu_custom_call.1} parent=1 // pred_fallthru
      _
    // Predicated region
    $region62: #{tpu_custom_call.1} parent=1 // pred_check
      _
    $region63: #{tpu_custom_call.1} parent=1 // pred_check_branch
      %126 = sbr.rel (0) target = $region65
    $region64: #{tpu_custom_call.1} parent=1 // pred_region
      %128 = dma.done [#allocation9], 1024
    $region65: #{tpu_custom_call.1} parent=1 // pred_fallthru
      _
    // Predicated region
    $region66: #{tpu_custom_call.1} parent=1 // pred_check
      _
    $region67: #{tpu_custom_call.1} parent=1 // pred_check_branch
      %130 = sbr.rel (0) target = $region69
    $region68: #{tpu_custom_call.1} parent=1 // pred_region
      %132 = dma.done [#allocation12], 1024
    $region69: #{tpu_custom_call.1} parent=1 // pred_fallthru
      _
    %v133 = vld [vmem:[#allocation2] sm:$0xff]
    %v134 = vld [vmem:[#allocation2 + $0x8] sm:$0xff]
    %v135 = vld [vmem:[#allocation5] sm:$0xf]
    %v136 = vld [vmem:[#allocation5 + $0x4] sm:$0xf]
    %v137 = vld [vmem:[#allocation5 + $0x8] sm:$0xf]
    %v138 = vld [vmem:[#allocation5 + $0xc] sm:$0xf]
    %v139 = vld [vmem:[#allocation5 + $0x10] sm:$0xf]
    %v140 = vld [vmem:[#allocation5 + $0x14] sm:$0xf]
    %v141 = vld [vmem:[#allocation5 + $0x18] sm:$0xf]
    %v142 = vld [vmem:[#allocation5 + $0x1c] sm:$0xf]
    %v143 = vld [vmem:[#allocation5 + $0x20] sm:$0xf]
    %v144 = vld [vmem:[#allocation5 + $0x24] sm:$0xf]
    %v145 = vld [vmem:[#allocation5 + $0x28] sm:$0xf]
    %v146 = vld [vmem:[#allocation5 + $0x2c] sm:$0xf]
    %v147 = vld [vmem:[#allocation5 + $0x30] sm:$0xf]
    %v148 = vld [vmem:[#allocation5 + $0x34] sm:$0xf]
    %v149 = vld [vmem:[#allocation5 + $0x38] sm:$0xf]
    %v150 = vld [vmem:[#allocation5 + $0x3c] sm:$0xf]
    %v151 = vld [vmem:[%s2] sm:$0x1]
    %v152 = vpack.c.bf16 %v134, %v133
    %v154 = vperm.slane %v151, 0
    %v172 = vunpack.c.l.b16 %v135
    %v173 = vunpack.c.l.b16 %v136
    %v174 = vunpack.c.l.b16 %v137
    %v175 = vunpack.c.l.b16 %v138
    %v176 = vunpack.c.l.b16 %v139
    %v177 = vunpack.c.l.b16 %v140
    %v178 = vunpack.c.l.b16 %v141
    %v179 = vunpack.c.l.b16 %v142
    %v180 = vunpack.c.l.b16 %v143
    %v181 = vunpack.c.l.b16 %v144
    %v182 = vunpack.c.l.b16 %v145
    %v183 = vunpack.c.l.b16 %v146
    %v184 = vunpack.c.l.b16 %v147
    %v185 = vunpack.c.l.b16 %v148
    %v186 = vunpack.c.l.b16 %v149
    %v187 = vunpack.c.l.b16 %v150
    %v188 = vpack.c.b16 %v173, %v172
    %v189 = vpack.c.b16 %v175, %v174
    %v190 = vpack.c.b16 %v177, %v176
    %v191 = vpack.c.b16 %v179, %v178
    %v192 = vpack.c.b16 %v181, %v180
    %v193 = vpack.c.b16 %v183, %v182
    %v194 = vpack.c.b16 %v185, %v184
    %v195 = vpack.c.b16 %v187, %v186
    %204 = vmatpush.bf16.msra.mxu0 %v195
    %205 = vmatpush.bf16.msra.mxu0 %v194
    %206 = vmatpush.bf16.msra.mxu0 %v193
    %207 = vmatpush.bf16.msra.mxu0 %v192
    %208 = vmatpush.bf16.msra.mxu0 %v191
    %209 = vmatpush.bf16.msra.mxu0 %v190
    %210 = vmatpush.bf16.msra.mxu0 %v189
    %211 = vmatpush.bf16.msra.mxu0 %v188
    %212 = vmatmul.bf16.gmra.mxu0 %v152
    %v213 = vpop.f32.mrf.mxu0
    %v214 = vadd.f32 %v154, %v213
    %v215 = vpop.f32.mrf.mxu0
    %v216 = vadd.f32 %v154, %v215
    %217 = vdwg.mxu0
    %v218 = vmul.f32 %v214, %v214
    %v219 = vmul.f32 %v216, %v216
    %v220 = vmul.f32 %v214, 0.5
    %v221 = vmul.f32 %v216, 0.5
    %v222 = vmul.f32 %v214, 0.7978846
    %v223 = vmul.f32 %v216, 0.7978846
    %v224 = vmul.f32 %v218, 0.044715
    %v225 = vmul.f32 %v219, 0.044715
    %v226 = vadd.f32 %v224, 1.0
    %v227 = vadd.f32 %v225, 1.0
    %v228 = vmul.f32 %v222, %v226
    %v229 = vmul.f32 %v223, %v227
    %v230 = vtanh.pop %v228
    %v231 = vtanh.pop %v229
    %v232 = vadd.f32 %v230, 1.0
    %v233 = vadd.f32 %v231, 1.0
    %v234 = vmul.f32 %v220, %v232
    %v235 = vmul.f32 %v221, %v233
    %v236 = vadd.f32 %v133, %v234
    %v237 = vadd.f32 %v134, %v235
    %v238 = vld [vmem:[#allocation7] sm:$0xf]
    %v239 = vld [vmem:[#allocation7 + $0x4] sm:$0xf]
    %v240 = vld [vmem:[#allocation7 + $0x8] sm:$0xf]
    %v241 = vld [vmem:[#allocation7 + $0xc] sm:$0xf]
    %v242 = vld [vmem:[#allocation7 + $0x10] sm:$0xf]
    %v243 = vld [vmem:[#allocation7 + $0x14] sm:$0xf]
    %v244 = vld [vmem:[#allocation7 + $0x18] sm:$0xf]
    %v245 = vld [vmem:[#allocation7 + $0x1c] sm:$0xf]
    %v246 = vld [vmem:[#allocation7 + $0x20] sm:$0xf]
    %v247 = vld [vmem:[#allocation7 + $0x24] sm:$0xf]
    %v248 = vld [vmem:[#allocation7 + $0x28] sm:$0xf]
    %v249 = vld [vmem:[#allocation7 + $0x2c] sm:$0xf]
    %v250 = vld [vmem:[#allocation7 + $0x30] sm:$0xf]
    %v251 = vld [vmem:[#allocation7 + $0x34] sm:$0xf]
    %v252 = vld [vmem:[#allocation7 + $0x38] sm:$0xf]
    %v253 = vld [vmem:[#allocation7 + $0x3c] sm:$0xf]
    %v254 = vld [vmem:[%s4] sm:$0x1]
    %v255 = vpack.c.bf16 %v237, %v236
    %v257 = vperm.slane %v254, 0
    %v275 = vunpack.c.l.b16 %v238
    %v276 = vunpack.c.l.b16 %v239
    %v277 = vunpack.c.l.b16 %v240
    %v278 = vunpack.c.l.b16 %v241
    %v279 = vunpack.c.l.b16 %v242
    %v280 = vunpack.c.l.b16 %v243
    %v281 = vunpack.c.l.b16 %v244
    %v282 = vunpack.c.l.b16 %v245
    %v283 = vunpack.c.l.b16 %v246
    %v284 = vunpack.c.l.b16 %v247
    %v285 = vunpack.c.l.b16 %v248
    %v286 = vunpack.c.l.b16 %v249
    %v287 = vunpack.c.l.b16 %v250
    %v288 = vunpack.c.l.b16 %v251
    %v289 = vunpack.c.l.b16 %v252
    %v290 = vunpack.c.l.b16 %v253
    %v291 = vpack.c.b16 %v276, %v275
    %v292 = vpack.c.b16 %v278, %v277
    %v293 = vpack.c.b16 %v280, %v279
    %v294 = vpack.c.b16 %v282, %v281
    %v295 = vpack.c.b16 %v284, %v283
    %v296 = vpack.c.b16 %v286, %v285
    %v297 = vpack.c.b16 %v288, %v287
    %v298 = vpack.c.b16 %v290, %v289
    %307 = vmatpush.bf16.msra.mxu0 %v298
    %308 = vmatpush.bf16.msra.mxu0 %v297
    %309 = vmatpush.bf16.msra.mxu0 %v296
    %310 = vmatpush.bf16.msra.mxu0 %v295
    %311 = vmatpush.bf16.msra.mxu0 %v294
    %312 = vmatpush.bf16.msra.mxu0 %v293
    %313 = vmatpush.bf16.msra.mxu0 %v292
    %314 = vmatpush.bf16.msra.mxu0 %v291
    %315 = vmatmul.bf16.gmra.mxu0 %v255
    %v316 = vpop.f32.mrf.mxu0
    %v317 = vadd.f32 %v257, %v316
    %v318 = vpop.f32.mrf.mxu0
    %v319 = vadd.f32 %v257, %v318
    %320 = vdwg.mxu0
    %v321 = vmul.f32 %v317, %v317
    %v322 = vmul.f32 %v319, %v319
    %v323 = vmul.f32 %v317, 0.5
    %v324 = vmul.f32 %v319, 0.5
    %v325 = vmul.f32 %v317, 0.7978846
    %v326 = vmul.f32 %v319, 0.7978846
    %v327 = vmul.f32 %v321, 0.044715
    %v328 = vmul.f32 %v322, 0.044715
    %v329 = vadd.f32 %v327, 1.0
    %v330 = vadd.f32 %v328, 1.0
    %v331 = vmul.f32 %v325, %v329
    %v332 = vmul.f32 %v326, %v330
    %v333 = vtanh.pop %v331
    %v334 = vtanh.pop %v332
    %v335 = vadd.f32 %v333, 1.0
    %v336 = vadd.f32 %v334, 1.0
    %v337 = vmul.f32 %v323, %v335
    %v338 = vmul.f32 %v324, %v336
    %v339 = vadd.f32 %v236, %v337
    %v340 = vadd.f32 %v237, %v338
    %v341 = vld [vmem:[#allocation8] sm:$0xf]
    %v342 = vld [vmem:[#allocation8 + $0x4] sm:$0xf]
    %v343 = vld [vmem:[#allocation8 + $0x8] sm:$0xf]
    %v344 = vld [vmem:[#allocation8 + $0xc] sm:$0xf]
    %v345 = vld [vmem:[#allocation8 + $0x10] sm:$0xf]
    %v346 = vld [vmem:[#allocation8 + $0x14] sm:$0xf]
    %v347 = vld [vmem:[#allocation8 + $0x18] sm:$0xf]
    %v348 = vld [vmem:[#allocation8 + $0x1c] sm:$0xf]
    %v349 = vld [vmem:[#allocation8 + $0x20] sm:$0xf]
    %v350 = vld [vmem:[#allocation8 + $0x24] sm:$0xf]
    %v351 = vld [vmem:[#allocation8 + $0x28] sm:$0xf]
    %v352 = vld [vmem:[#allocation8 + $0x2c] sm:$0xf]
    %v353 = vld [vmem:[#allocation8 + $0x30] sm:$0xf]
    %v354 = vld [vmem:[#allocation8 + $0x34] sm:$0xf]
    %v355 = vld [vmem:[#allocation8 + $0x38] sm:$0xf]
    %v356 = vld [vmem:[#allocation8 + $0x3c] sm:$0xf]
    %v357 = vld [vmem:[%s6] sm:$0x1]
    %v358 = vpack.c.bf16 %v340, %v339
    %v360 = vperm.slane %v357, 0
    %v378 = vunpack.c.l.b16 %v341
    %v379 = vunpack.c.l.b16 %v342
    %v380 = vunpack.c.l.b16 %v343
    %v381 = vunpack.c.l.b16 %v344
    %v382 = vunpack.c.l.b16 %v345
    %v383 = vunpack.c.l.b16 %v346
    %v384 = vunpack.c.l.b16 %v347
    %v385 = vunpack.c.l.b16 %v348
    %v386 = vunpack.c.l.b16 %v349
    %v387 = vunpack.c.l.b16 %v350
    %v388 = vunpack.c.l.b16 %v351
    %v389 = vunpack.c.l.b16 %v352
    %v390 = vunpack.c.l.b16 %v353
    %v391 = vunpack.c.l.b16 %v354
    %v392 = vunpack.c.l.b16 %v355
    %v393 = vunpack.c.l.b16 %v356
    %v394 = vpack.c.b16 %v379, %v378
    %v395 = vpack.c.b16 %v381, %v380
    %v396 = vpack.c.b16 %v383, %v382
    %v397 = vpack.c.b16 %v385, %v384
    %v398 = vpack.c.b16 %v387, %v386
    %v399 = vpack.c.b16 %v389, %v388
    %v400 = vpack.c.b16 %v391, %v390
    %v401 = vpack.c.b16 %v393, %v392
    %410 = vmatpush.bf16.msra.mxu0 %v401
    %411 = vmatpush.bf16.msra.mxu0 %v400
    %412 = vmatpush.bf16.msra.mxu0 %v399
    %413 = vmatpush.bf16.msra.mxu0 %v398
    %414 = vmatpush.bf16.msra.mxu0 %v397
    %415 = vmatpush.bf16.msra.mxu0 %v396
    %416 = vmatpush.bf16.msra.mxu0 %v395
    %417 = vmatpush.bf16.msra.mxu0 %v394
    %418 = vmatmul.bf16.gmra.mxu0 %v358
    %v419 = vpop.f32.mrf.mxu0
    %v420 = vadd.f32 %v360, %v419
    %v421 = vpop.f32.mrf.mxu0
    %v422 = vadd.f32 %v360, %v421
    %423 = vdwg.mxu0
    %v424 = vmul.f32 %v420, %v420
    %v425 = vmul.f32 %v422, %v422
    %v426 = vmul.f32 %v420, 0.5
    %v427 = vmul.f32 %v422, 0.5
    %v428 = vmul.f32 %v420, 0.7978846
    %v429 = vmul.f32 %v422, 0.7978846
    %v430 = vmul.f32 %v424, 0.044715
    %v431 = vmul.f32 %v425, 0.044715
    %v432 = vadd.f32 %v430, 1.0
    %v433 = vadd.f32 %v431, 1.0
    %v434 = vmul.f32 %v428, %v432
    %v435 = vmul.f32 %v429, %v433
    %v436 = vtanh.pop %v434
    %v437 = vtanh.pop %v435
    %v438 = vadd.f32 %v436, 1.0
    %v439 = vadd.f32 %v437, 1.0
    %v440 = vmul.f32 %v426, %v438
    %v441 = vmul.f32 %v427, %v439
    %v442 = vadd.f32 %v339, %v440
    %v443 = vadd.f32 %v340, %v441
    %v444 = vld [vmem:[#allocation10] sm:$0xf]
    %v445 = vld [vmem:[#allocation10 + $0x4] sm:$0xf]
    %v446 = vld [vmem:[#allocation10 + $0x8] sm:$0xf]
    %v447 = vld [vmem:[#allocation10 + $0xc] sm:$0xf]
    %v448 = vld [vmem:[#allocation10 + $0x10] sm:$0xf]
    %v449 = vld [vmem:[#allocation10 + $0x14] sm:$0xf]
    %v450 = vld [vmem:[#allocation10 + $0x18] sm:$0xf]
    %v451 = vld [vmem:[#allocation10 + $0x1c] sm:$0xf]
    %v452 = vld [vmem:[#allocation10 + $0x20] sm:$0xf]
    %v453 = vld [vmem:[#allocation10 + $0x24] sm:$0xf]
    %v454 = vld [vmem:[#allocation10 + $0x28] sm:$0xf]
    %v455 = vld [vmem:[#allocation10 + $0x2c] sm:$0xf]
    %v456 = vld [vmem:[#allocation10 + $0x30] sm:$0xf]
    %v457 = vld [vmem:[#allocation10 + $0x34] sm:$0xf]
    %v458 = vld [vmem:[#allocation10 + $0x38] sm:$0xf]
    %v459 = vld [vmem:[#allocation10 + $0x3c] sm:$0xf]
    %v460 = vld [vmem:[%s8] sm:$0x1]
    %v461 = vpack.c.bf16 %v443, %v442
    %v463 = vperm.slane %v460, 0
    %v481 = vunpack.c.l.b16 %v444
    %v482 = vunpack.c.l.b16 %v445
    %v483 = vunpack.c.l.b16 %v446
    %v484 = vunpack.c.l.b16 %v447
    %v485 = vunpack.c.l.b16 %v448
    %v486 = vunpack.c.l.b16 %v449
    %v487 = vunpack.c.l.b16 %v450
    %v488 = vunpack.c.l.b16 %v451
    %v489 = vunpack.c.l.b16 %v452
    %v490 = vunpack.c.l.b16 %v453
    %v491 = vunpack.c.l.b16 %v454
    %v492 = vunpack.c.l.b16 %v455
    %v493 = vunpack.c.l.b16 %v456
    %v494 = vunpack.c.l.b16 %v457
    %v495 = vunpack.c.l.b16 %v458
    %v496 = vunpack.c.l.b16 %v459
    %v497 = vpack.c.b16 %v482, %v481
    %v498 = vpack.c.b16 %v484, %v483
    %v499 = vpack.c.b16 %v486, %v485
    %v500 = vpack.c.b16 %v488, %v487
    %v501 = vpack.c.b16 %v490, %v489
    %v502 = vpack.c.b16 %v492, %v491
    %v503 = vpack.c.b16 %v494, %v493
    %v504 = vpack.c.b16 %v496, %v495
    %513 = vmatpush.bf16.msra.mxu0 %v504
    %514 = vmatpush.bf16.msra.mxu0 %v503
    %515 = vmatpush.bf16.msra.mxu0 %v502
    %516 = vmatpush.bf16.msra.mxu0 %v501
    %517 = vmatpush.bf16.msra.mxu0 %v500
    %518 = vmatpush.bf16.msra.mxu0 %v499
    %519 = vmatpush.bf16.msra.mxu0 %v498
    %520 = vmatpush.bf16.msra.mxu0 %v497
    %521 = vmatmul.bf16.gmra.mxu0 %v461
    %v522 = vpop.f32.mrf.mxu0
    %v523 = vadd.f32 %v463, %v522
    %v524 = vpop.f32.mrf.mxu0
    %v525 = vadd.f32 %v463, %v524
    %526 = vdwg.mxu0
    %v527 = vmul.f32 %v523, %v523
    %v528 = vmul.f32 %v525, %v525
    %v529 = vmul.f32 %v523, 0.5
    %v530 = vmul.f32 %v525, 0.5
    %v531 = vmul.f32 %v523, 0.7978846
    %v532 = vmul.f32 %v525, 0.7978846
    %v533 = vmul.f32 %v527, 0.044715
    %v534 = vmul.f32 %v528, 0.044715
    %v535 = vadd.f32 %v533, 1.0
    %v536 = vadd.f32 %v534, 1.0
    %v537 = vmul.f32 %v531, %v535
    %v538 = vmul.f32 %v532, %v536
    %v539 = vtanh.pop %v537
    %v540 = vtanh.pop %v538
    %v541 = vadd.f32 %v539, 1.0
    %v542 = vadd.f32 %v540, 1.0
    %v543 = vmul.f32 %v529, %v541
    %v544 = vmul.f32 %v530, %v542
    %v545 = vadd.f32 %v442, %v543
    %v546 = vadd.f32 %v443, %v544
    %v547 = vld [vmem:[#allocation11] sm:$0xf]
    %v548 = vld [vmem:[#allocation11 + $0x4] sm:$0xf]
    %v549 = vld [vmem:[#allocation11 + $0x8] sm:$0xf]
    %v550 = vld [vmem:[#allocation11 + $0xc] sm:$0xf]
    %v551 = vld [vmem:[#allocation11 + $0x10] sm:$0xf]
    %v552 = vld [vmem:[#allocation11 + $0x14] sm:$0xf]
    %v553 = vld [vmem:[#allocation11 + $0x18] sm:$0xf]
    %v554 = vld [vmem:[#allocation11 + $0x1c] sm:$0xf]
    %v555 = vld [vmem:[#allocation11 + $0x20] sm:$0xf]
    %v556 = vld [vmem:[#allocation11 + $0x24] sm:$0xf]
    %v557 = vld [vmem:[#allocation11 + $0x28] sm:$0xf]
    %v558 = vld [vmem:[#allocation11 + $0x2c] sm:$0xf]
    %v559 = vld [vmem:[#allocation11 + $0x30] sm:$0xf]
    %v560 = vld [vmem:[#allocation11 + $0x34] sm:$0xf]
    %v561 = vld [vmem:[#allocation11 + $0x38] sm:$0xf]
    %v562 = vld [vmem:[#allocation11 + $0x3c] sm:$0xf]
    %v563 = vld [vmem:[%s10] sm:$0x1]
    %v564 = vpack.c.bf16 %v546, %v545
    %v566 = vperm.slane %v563, 0
    %v584 = vunpack.c.l.b16 %v547
    %v585 = vunpack.c.l.b16 %v548
    %v586 = vunpack.c.l.b16 %v549
    %v587 = vunpack.c.l.b16 %v550
    %v588 = vunpack.c.l.b16 %v551
    %v589 = vunpack.c.l.b16 %v552
    %v590 = vunpack.c.l.b16 %v553
    %v591 = vunpack.c.l.b16 %v554
    %v592 = vunpack.c.l.b16 %v555
    %v593 = vunpack.c.l.b16 %v556
    %v594 = vunpack.c.l.b16 %v557
    %v595 = vunpack.c.l.b16 %v558
    %v596 = vunpack.c.l.b16 %v559
    %v597 = vunpack.c.l.b16 %v560
    %v598 = vunpack.c.l.b16 %v561
    %v599 = vunpack.c.l.b16 %v562
    %v600 = vpack.c.b16 %v585, %v584
    %v601 = vpack.c.b16 %v587, %v586
    %v602 = vpack.c.b16 %v589, %v588
    %v603 = vpack.c.b16 %v591, %v590
    %v604 = vpack.c.b16 %v593, %v592
    %v605 = vpack.c.b16 %v595, %v594
    %v606 = vpack.c.b16 %v597, %v596
    %v607 = vpack.c.b16 %v599, %v598
    %616 = vmatpush.bf16.msra.mxu0 %v607
    %617 = vmatpush.bf16.msra.mxu0 %v606
    %618 = vmatpush.bf16.msra.mxu0 %v605
    %619 = vmatpush.bf16.msra.mxu0 %v604
    %620 = vmatpush.bf16.msra.mxu0 %v603
    %621 = vmatpush.bf16.msra.mxu0 %v602
    %622 = vmatpush.bf16.msra.mxu0 %v601
    %623 = vmatpush.bf16.msra.mxu0 %v600
    %624 = vmatmul.bf16.gmra.mxu0 %v564
    %v625 = vpop.f32.mrf.mxu0
    %v626 = vadd.f32 %v566, %v625
    %v627 = vpop.f32.mrf.mxu0
    %v628 = vadd.f32 %v566, %v627
    %629 = vdwg.mxu0
    %v630 = vmul.f32 %v626, %v626
    %v631 = vmul.f32 %v628, %v628
    %v632 = vmul.f32 %v626, 0.5
    %v633 = vmul.f32 %v628, 0.5
    %v634 = vmul.f32 %v626, 0.7978846
    %v635 = vmul.f32 %v628, 0.7978846
    %v636 = vmul.f32 %v630, 0.044715
    %v637 = vmul.f32 %v631, 0.044715
    %v638 = vadd.f32 %v636, 1.0
    %v639 = vadd.f32 %v637, 1.0
    %v640 = vmul.f32 %v634, %v638
    %v641 = vmul.f32 %v635, %v639
    %v642 = vtanh.pop %v640
    %v643 = vtanh.pop %v641
    %v644 = vadd.f32 %v642, 1.0
    %v645 = vadd.f32 %v643, 1.0
    %v646 = vmul.f32 %v632, %v644
    %v647 = vmul.f32 %v633, %v645
    %v648 = vadd.f32 %v545, %v646
    %v649 = vadd.f32 %v546, %v647
    %650 = vst [vmem:[#allocation13] sm:$0xff] %v648
    %651 = vst [vmem:[#allocation13 + $0x8] sm:$0xff] %v649
    // Predicated region
    $region70: #{tpu_custom_call.1} parent=1 // pred_check
      _
    $region71: #{tpu_custom_call.1} parent=1 // pred_check_branch
      %653 = sbr.rel (0) target = $region73
    $region72: #{tpu_custom_call.1} parent=1 // pred_region
      %655 = vsyncadd [#allocation4], 0
      %s656 = sshll.u32 [#allocation13], 4
      %s657 = int_to_ptr.vmem [resolvable:$true] %s656
      %s658 = sshll.u32 %s11, 4
      %s659 = int_to_ptr.hbm [resolvable:$true] %s658
      %664 = dma.vmem_to_hbm [thread:$0]  %s657, 256, %s659, [#allocation4], 128, 128, 8
    $region73: #{tpu_custom_call.1} parent=1 // pred_fallthru
      _
    // Predicated region
    $region74: #{tpu_custom_call.1} parent=1 // pred_check
      _
    $region75: #{tpu_custom_call.1} parent=1 // pred_check_branch
      %666 = sbr.rel (0) target = $region77
    $region76: #{tpu_custom_call.1} parent=1 // pred_region
      %668 = dma.done [#allocation4], 256
    $region77: #{tpu_custom_call.1} parent=1 // pred_fallthru
      _
    %669 = vsyncpa [#allocation3], 1
    %670 = vsyncpa [#allocation6], 1
    %671 = vsyncpa [#allocation9], 1
    %672 = vsyncpa [#allocation12], 1
    %673 = vsyncpa [#allocation4], 1

</llo_original>
